<compile_context>
chip_gen: v7x
topology: tpu7x:2x2x1
jax: 0.10.0
libtpu: 0.0.40
codegen_flags: <defaults>
</compile_context>

<pallas_src>
import jax
import jax.numpy as jnp
from jax.experimental import pallas as pl
from jax.experimental.pallas import tpu as pltpu

_LANE = 128                         # fixed lane width
_TB_MAX = 8                         # max batch tile
_STEP_BYTES = 8 * 1024 * 1024       # target per-grid-step input bytes (x2 when double-buffered)
_VMEM_LIMIT = 48 * 1024 * 1024      # explicit scoped-VMEM cap (fits v7x 64 MiB physical)


def snr_loss_kernel(out_ref, s1_ref, s2_ref, loss_ref, acc_ref):
    """out_ref: (TB, 2, TM, 128); s*_ref: (TB, TM, 128); loss_ref: (TB, 1, 128);
    acc_ref: (8, TB, 128) lane-resident partial sums (cross-lane reduce deferred)."""
    k = pl.program_id(1)
    nk = pl.num_programs(1)

    @pl.when(k == 0)
    def _():
        acc_ref[...] = jnp.zeros_like(acc_ref)

    out0 = out_ref[:, 0, :, :].astype(jnp.float32)   # (TB, TM, 128)
    out1 = out_ref[:, 1, :, :].astype(jnp.float32)
    s1 = s1_ref[...].astype(jnp.float32)
    s2 = s2_ref[...].astype(jnp.float32)

    def psum(x):  # (TB, TM, 128) -> (TB, 128): sublane-axis only (mostly VPU vreg adds)
        return jnp.sum(x, axis=1)

    # 8 streamed reductions (4 cross dots + 4 energies), accumulated across L tiles.
    acc_ref[0] += psum(out0 * s1)      # <out0, s1>
    acc_ref[1] += psum(out0 * s2)      # <out0, s2>
    acc_ref[2] += psum(out1 * s1)      # <out1, s1>
    acc_ref[3] += psum(out1 * s2)      # <out1, s2>
    acc_ref[4] += psum(out0 * out0)    # ||out0||^2
    acc_ref[5] += psum(out1 * out1)    # ||out1||^2
    acc_ref[6] += psum(s1 * s1)        # ||s1||^2   (shared by both permutations)
    acc_ref[7] += psum(s2 * s2)        # ||s2||^2   (shared by both permutations)

    @pl.when(k == nk - 1)
    def _():
        # Single cross-lane reduce (XLU) of the tiny (8, TB, 128) accumulator.
        a = jnp.sum(acc_ref[...], axis=2, keepdims=True)          # (8, TB, 1)
        d0s1, d0s2, d1s1, d1s2 = a[0], a[1], a[2], a[3]            # (TB, 1) each
        e0, e1, es1, es2 = a[4], a[5], a[6], a[7]

        eps = jnp.float32(1e-12)

        def neg_snr(dot, e_out, e_tgt):
            # ||signal||^2 = dot^2 / ||tgt||^2 ; ||noise||^2 = ||out||^2 - ||signal||^2
            sig = dot * dot / jnp.maximum(e_tgt, eps)
            # Guard the cancellation-prone noise term (high-SNR / near-copy case).
            noi = jnp.maximum(e_out - sig, eps * jnp.maximum(e_out, eps))
            return -10.0 * (jnp.log10(jnp.maximum(sig, eps)) - jnp.log10(noi))

        loss1 = neg_snr(d0s1, e0, es1) + neg_snr(d1s2, e1, es2)    # (TB, 1)
        loss2 = neg_snr(d0s2, e0, es2) + neg_snr(d1s1, e1, es1)    # (TB, 1)
        loss = jnp.minimum(loss1, loss2)                           # (TB, 1)
        # Lane-dense output store: broadcast the per-example loss across 128 lanes.
        loss_ref[...] = jnp.broadcast_to(loss[:, :, None], loss_ref.shape).astype(
            loss_ref.dtype)


def _choose_tb(b):
    """Largest divisor of b that is <= _TB_MAX while leaving >= 2 grid steps on the
    parallel batch axis (so both v7x TensorCores get work). Returns 1 for b == 1."""
    upper = min(b // 2, _TB_MAX)
    for cand in range(upper, 0, -1):
        if b % cand == 0:
            return cand
    return 1


def snr_loss(output_wav, speaker_1_wav, speaker_2_wav, *, step_bytes=_STEP_BYTES):
    """output_wav: (B, 2, L); speaker_*_wav: (B, 1, L). Returns {'loss': scalar}."""
    B, two, L = output_wav.shape
    assert two == 2
    assert speaker_1_wav.shape == (B, 1, L)
    assert speaker_2_wav.shape == (B, 1, L)

    itemsize = jnp.dtype(output_wav.dtype).itemsize

    # --- batch tiling: tb | B, tb <= 8, and >= 2 parallel steps whenever B >= 2 ----
    tb = _choose_tb(B)
    n_b = B // tb

    # --- L tiling: fold L into (sublane, lane); size per-step inputs to ~step_bytes -
    m_rows = pl.cdiv(L, _LANE)
    tm_cap = max(8, (step_bytes // (tb * 4 * _LANE * itemsize)) // 8 * 8)
    if m_rows <= tm_cap:
        tm = m_rows          # single L step; block == full dim (no 8-alignment needed)
    else:
        tm = tm_cap          # multiple of 8
    tile_len = tm * _LANE
    n_k = pl.cdiv(L, tile_len)
    l_pad = n_k * tile_len
    if l_pad != L:
        # Zero padding along L is exact for every accumulated dot / energy.
        pad = l_pad - L
        output_wav = jnp.pad(output_wav, ((0, 0), (0, 0), (0, pad)))
        speaker_1_wav = jnp.pad(speaker_1_wav, ((0, 0), (0, 0), (0, pad)))
        speaker_2_wav = jnp.pad(speaker_2_wav, ((0, 0), (0, 0), (0, pad)))
    m_total = l_pad // _LANE

    # Free, contiguous reshapes: fold L into (sublane, lane) for full vreg occupancy.
    out_r = output_wav.reshape(B, 2, m_total, _LANE)
    s1_r = speaker_1_wav.reshape(B, m_total, _LANE)
    s2_r = speaker_2_wav.reshape(B, m_total, _LANE)

    per_example = pl.pallas_call(
        snr_loss_kernel,
        out_shape=jax.ShapeDtypeStruct((B, 1, _LANE), jnp.float32),
        grid_spec=pltpu.PrefetchScalarGridSpec(
            num_scalar_prefetch=0,
            grid=(n_b, n_k),
            in_specs=[
                pl.BlockSpec((tb, 2, tm, _LANE), lambda b, k: (b, 0, k, 0)),
                pl.BlockSpec((tb, tm, _LANE), lambda b, k: (b, k, 0)),
                pl.BlockSpec((tb, tm, _LANE), lambda b, k: (b, k, 0)),
            ],
            out_specs=pl.BlockSpec((tb, 1, _LANE), lambda b, k: (b, 0, 0)),
            scratch_shapes=[pltpu.VMEM((8, tb, _LANE), jnp.float32)],
        ),
        compiler_params=pltpu.CompilerParams(
            dimension_semantics=("parallel", "arbitrary"),
            vmem_limit_bytes=_VMEM_LIMIT,
        ),
    )(out_r, s1_r, s2_r)

    # Trivial (B,)->scalar mean kept outside so the B grid axis stays parallel.
    return {"loss": jnp.mean(per_example[:, 0, 0])}


def _snr_loss_ref(output_wav, speaker_1_wav, speaker_2_wav):
    """Pure-JAX reference mirroring the PyTorch module."""
    def calc(out, tgt):
        dot = jnp.sum(out * tgt, axis=1, keepdims=True)
        norm_t = jnp.sum(tgt ** 2, axis=1, keepdims=True)
        signal = dot * tgt / norm_t
        noise = out - signal
        snr = 10.0 * jnp.log10(
            jnp.sum(signal ** 2, axis=1, keepdims=True)
            / jnp.sum(noise ** 2, axis=1, keepdims=True)
        )
        return -snr

    out0, out1 = output_wav[:, 0], output_wav[:, 1]
    s1, s2 = speaker_1_wav[:, 0], speaker_2_wav[:, 0]
    loss1 = calc(out0, s1) + calc(out1, s2)
    loss2 = calc(out0, s2) + calc(out1, s1)
    return jnp.mean(jnp.minimum(loss1, loss2))


if __name__ == "__main__":
    key = jax.random.PRNGKey(0)
    ks = jax.random.split(key, 9)

    # Case 1: lane-aligned L, B=2 -> tb=1, n_b=2 (both v7x TCs get a batch step).
    B, L = 2, 1024
    ow = jax.random.normal(ks[0], (B, 2, L), dtype=jnp.float32)
    s1w = jax.random.normal(ks[1], (B, 1, L), dtype=jnp.float32)
    s2w = jax.random.normal(ks[2], (B, 1, L), dtype=jnp.float32)
    loss = jax.block_until_ready(snr_loss(ow, s1w, s2w)["loss"])
    ref = _snr_loss_ref(ow, s1w, s2w)
    assert jnp.allclose(loss, ref, rtol=1e-4, atol=1e-4), (loss, ref)

    # Case 2: ragged L, odd B (exercises exact zero-padding along L and tb=1 tiling).
    B2, L2 = 3, 1000
    ow2 = jax.random.normal(ks[3], (B2, 2, L2), dtype=jnp.float32)
    s1w2 = jax.random.normal(ks[4], (B2, 1, L2), dtype=jnp.float32)
    s2w2 = jax.random.normal(ks[5], (B2, 1, L2), dtype=jnp.float32)
    loss2 = jax.block_until_ready(snr_loss(ow2, s1w2, s2w2)["loss"])
    ref2 = _snr_loss_ref(ow2, s1w2, s2w2)
    assert jnp.allclose(loss2, ref2, rtol=1e-4, atol=1e-4), (loss2, ref2)

    # Case 3: B=4 -> tb=2, and a small step_bytes to force multiple L-accumulation
    # steps (exercises the k==0 init / k==last finalize accumulator path).
    B3, L3 = 4, 5000
    ow3 = jax.random.normal(ks[6], (B3, 2, L3), dtype=jnp.float32)
    s1w3 = jax.random.normal(ks[7], (B3, 1, L3), dtype=jnp.float32)
    s2w3 = jax.random.normal(ks[8], (B3, 1, L3), dtype=jnp.float32)
    loss3 = jax.block_until_ready(
        snr_loss(ow3, s1w3, s2w3, step_bytes=64 * 1024)["loss"])
    ref3 = _snr_loss_ref(ow3, s1w3, s2w3)
    assert jnp.allclose(loss3, ref3, rtol=1e-4, atol=1e-4), (loss3, ref3)

    print("KERNEL_OK")
</pallas_src>

<mosaic_0001>
module attributes {stable_mosaic.version = 11 : i64} {
  func.func @snr_loss_kernel(%arg0: i32, %arg1: i32, %arg2: memref<1x2x8x128xf32, #tpu.memory_space<vmem>>, %arg3: memref<1x8x128xf32, #tpu.memory_space<vmem>>, %arg4: memref<1x8x128xf32, #tpu.memory_space<vmem>>, %arg5: memref<1x1x128xf32, #tpu.memory_space<vmem>>, %arg6: memref<8x1x128xf32, #tpu.memory_space<vmem>>) attributes {dimension_semantics = [#tpu.dimension_semantics<parallel>, #tpu.dimension_semantics<arbitrary>], iteration_bounds = array<i64: 2, 1>, scalar_prefetch = 0 : i64, scratch_operands = 1 : i64, tpu.core_type = #tpu.core_type<tc>, window_params = [{transform_indices = @transform_0, window_bounds = array<i64: 1, 2, 8, 128>}, {transform_indices = @transform_1, window_bounds = array<i64: 1, 8, 128>}, {transform_indices = @transform_2, window_bounds = array<i64: 1, 8, 128>}, {transform_indices = @transform_3, window_bounds = array<i64: 1, 1, 128>}]} {
    %c0_i32 = arith.constant 0 : i32
    %0 = arith.cmpi eq, %arg1, %c0_i32 : i32
    %1 = arith.extui %0 : i1 to i32
    %c0_i32_0 = arith.constant 0 : i32
    %2 = arith.cmpi ne, %1, %c0_i32_0 : i32
    scf.if %2 {
      %cst_64 = arith.constant 0.000000e+00 : f32
      %76 = vector.broadcast %cst_64 : f32 to vector<8x1x128xf32>
      %c0_65 = arith.constant 0 : index
      %c0_66 = arith.constant 0 : index
      %c0_67 = arith.constant 0 : index
      %77 = vector.load %arg6[%c0_65, %c0_66, %c0_67] : memref<8x1x128xf32, #tpu.memory_space<vmem>>, vector<8x1x128xf32>
      tpu.vector_store %arg6[%c0_65, %c0_66, %c0_67], %76 {strides = array<i32>} : memref<8x1x128xf32, #tpu.memory_space<vmem>>, vector<8x1x128xf32>,
    } else {
    }
    %c0 = arith.constant 0 : index
    %c0_1 = arith.constant 0 : index
    %c0_2 = arith.constant 0 : index
    %c0_3 = arith.constant 0 : index
    %3 = vector.load %arg2[%c0, %c0_1, %c0_2, %c0_3] : memref<1x2x8x128xf32, #tpu.memory_space<vmem>>, vector<1x1x8x128xf32>
    %4 = vector.shape_cast %3 : vector<1x1x8x128xf32> to vector<1x8x128xf32>
    %c0_4 = arith.constant 0 : index
    %c1 = arith.constant 1 : index
    %c0_5 = arith.constant 0 : index
    %c0_6 = arith.constant 0 : index
    %5 = vector.load %arg2[%c0_4, %c1, %c0_5, %c0_6] : memref<1x2x8x128xf32, #tpu.memory_space<vmem>>, vector<1x1x8x128xf32>
    %6 = vector.shape_cast %5 : vector<1x1x8x128xf32> to vector<1x8x128xf32>
    %c0_7 = arith.constant 0 : index
    %c0_8 = arith.constant 0 : index
    %c0_9 = arith.constant 0 : index
    %7 = vector.load %arg3[%c0_7, %c0_8, %c0_9] : memref<1x8x128xf32, #tpu.memory_space<vmem>>, vector<1x8x128xf32>
    %c0_10 = arith.constant 0 : index
    %c0_11 = arith.constant 0 : index
    %c0_12 = arith.constant 0 : index
    %8 = vector.load %arg4[%c0_10, %c0_11, %c0_12] : memref<1x8x128xf32, #tpu.memory_space<vmem>>, vector<1x8x128xf32>
    %c0_13 = arith.constant 0 : index
    %c0_14 = arith.constant 0 : index
    %c0_15 = arith.constant 0 : index
    %9 = vector.load %arg6[%c0_13, %c0_14, %c0_15] : memref<8x1x128xf32, #tpu.memory_space<vmem>>, vector<1x1x128xf32>
    %10 = vector.shape_cast %9 : vector<1x1x128xf32> to vector<1x128xf32>
    %11 = arith.mulf %4, %7 : vector<1x8x128xf32>
    %cst = arith.constant dense<0.000000e+00> : vector<1x128xf32>
    %12 = vector.multi_reduction <add>, %11, %cst [1] : vector<1x8x128xf32> to vector<1x128xf32>
    %13 = arith.addf %10, %12 : vector<1x128xf32>
    %c0_16 = arith.constant 0 : index
    %c0_17 = arith.constant 0 : index
    %c0_18 = arith.constant 0 : index
    %14 = vector.load %arg6[%c0_16, %c0_17, %c0_18] : memref<8x1x128xf32, #tpu.memory_space<vmem>>, vector<1x1x128xf32>
    %15 = vector.shape_cast %14 : vector<1x1x128xf32> to vector<1x128xf32>
    %16 = vector.shape_cast %13 : vector<1x128xf32> to vector<1x1x128xf32>
    tpu.vector_store %arg6[%c0_16, %c0_17, %c0_18], %16 {strides = array<i32>} : memref<8x1x128xf32, #tpu.memory_space<vmem>>, vector<1x1x128xf32>,
    %c1_19 = arith.constant 1 : index
    %c0_20 = arith.constant 0 : index
    %c0_21 = arith.constant 0 : index
    %17 = vector.load %arg6[%c1_19, %c0_20, %c0_21] : memref<8x1x128xf32, #tpu.memory_space<vmem>>, vector<1x1x128xf32>
    %18 = vector.shape_cast %17 : vector<1x1x128xf32> to vector<1x128xf32>
    %19 = arith.mulf %4, %8 : vector<1x8x128xf32>
    %cst_22 = arith.constant dense<0.000000e+00> : vector<1x128xf32>
    %20 = vector.multi_reduction <add>, %19, %cst_22 [1] : vector<1x8x128xf32> to vector<1x128xf32>
    %21 = arith.addf %18, %20 : vector<1x128xf32>
    %c1_23 = arith.constant 1 : index
    %c0_24 = arith.constant 0 : index
    %c0_25 = arith.constant 0 : index
    %22 = vector.load %arg6[%c1_23, %c0_24, %c0_25] : memref<8x1x128xf32, #tpu.memory_space<vmem>>, vector<1x1x128xf32>
    %23 = vector.shape_cast %22 : vector<1x1x128xf32> to vector<1x128xf32>
    %24 = vector.shape_cast %21 : vector<1x128xf32> to vector<1x1x128xf32>
    tpu.vector_store %arg6[%c1_23, %c0_24, %c0_25], %24 {strides = array<i32>} : memref<8x1x128xf32, #tpu.memory_space<vmem>>, vector<1x1x128xf32>,
    %c2 = arith.constant 2 : index
    %c0_26 = arith.constant 0 : index
    %c0_27 = arith.constant 0 : index
    %25 = vector.load %arg6[%c2, %c0_26, %c0_27] : memref<8x1x128xf32, #tpu.memory_space<vmem>>, vector<1x1x128xf32>
    %26 = vector.shape_cast %25 : vector<1x1x128xf32> to vector<1x128xf32>
    %27 = arith.mulf %6, %7 : vector<1x8x128xf32>
    %cst_28 = arith.constant dense<0.000000e+00> : vector<1x128xf32>
    %28 = vector.multi_reduction <add>, %27, %cst_28 [1] : vector<1x8x128xf32> to vector<1x128xf32>
    %29 = arith.addf %26, %28 : vector<1x128xf32>
    %c2_29 = arith.constant 2 : index
    %c0_30 = arith.constant 0 : index
    %c0_31 = arith.constant 0 : index
    %30 = vector.load %arg6[%c2_29, %c0_30, %c0_31] : memref<8x1x128xf32, #tpu.memory_space<vmem>>, vector<1x1x128xf32>
    %31 = vector.shape_cast %30 : vector<1x1x128xf32> to vector<1x128xf32>
    %32 = vector.shape_cast %29 : vector<1x128xf32> to vector<1x1x128xf32>
    tpu.vector_store %arg6[%c2_29, %c0_30, %c0_31], %32 {strides = array<i32>} : memref<8x1x128xf32, #tpu.memory_space<vmem>>, vector<1x1x128xf32>,
    %c3 = arith.constant 3 : index
    %c0_32 = arith.constant 0 : index
    %c0_33 = arith.constant 0 : index
    %33 = vector.load %arg6[%c3, %c0_32, %c0_33] : memref<8x1x128xf32, #tpu.memory_space<vmem>>, vector<1x1x128xf32>
    %34 = vector.shape_cast %33 : vector<1x1x128xf32> to vector<1x128xf32>
    %35 = arith.mulf %6, %8 : vector<1x8x128xf32>
    %cst_34 = arith.constant dense<0.000000e+00> : vector<1x128xf32>
    %36 = vector.multi_reduction <add>, %35, %cst_34 [1] : vector<1x8x128xf32> to vector<1x128xf32>
    %37 = arith.addf %34, %36 : vector<1x128xf32>
    %c3_35 = arith.constant 3 : index
    %c0_36 = arith.constant 0 : index
    %c0_37 = arith.constant 0 : index
    %38 = vector.load %arg6[%c3_35, %c0_36, %c0_37] : memref<8x1x128xf32, #tpu.memory_space<vmem>>, vector<1x1x128xf32>
    %39 = vector.shape_cast %38 : vector<1x1x128xf32> to vector<1x128xf32>
    %40 = vector.shape_cast %37 : vector<1x128xf32> to vector<1x1x128xf32>
    tpu.vector_store %arg6[%c3_35, %c0_36, %c0_37], %40 {strides = array<i32>} : memref<8x1x128xf32, #tpu.memory_space<vmem>>, vector<1x1x128xf32>,
    %c4 = arith.constant 4 : index
    %c0_38 = arith.constant 0 : index
    %c0_39 = arith.constant 0 : index
    %41 = vector.load %arg6[%c4, %c0_38, %c0_39] : memref<8x1x128xf32, #tpu.memory_space<vmem>>, vector<1x1x128xf32>
    %42 = vector.shape_cast %41 : vector<1x1x128xf32> to vector<1x128xf32>
    %43 = arith.mulf %4, %4 : vector<1x8x128xf32>
    %cst_40 = arith.constant dense<0.000000e+00> : vector<1x128xf32>
    %44 = vector.multi_reduction <add>, %43, %cst_40 [1] : vector<1x8x128xf32> to vector<1x128xf32>
    %45 = arith.addf %42, %44 : vector<1x128xf32>
    %c4_41 = arith.constant 4 : index
    %c0_42 = arith.constant 0 : index
    %c0_43 = arith.constant 0 : index
    %46 = vector.load %arg6[%c4_41, %c0_42, %c0_43] : memref<8x1x128xf32, #tpu.memory_space<vmem>>, vector<1x1x128xf32>
    %47 = vector.shape_cast %46 : vector<1x1x128xf32> to vector<1x128xf32>
    %48 = vector.shape_cast %45 : vector<1x128xf32> to vector<1x1x128xf32>
    tpu.vector_store %arg6[%c4_41, %c0_42, %c0_43], %48 {strides = array<i32>} : memref<8x1x128xf32, #tpu.memory_space<vmem>>, vector<1x1x128xf32>,
    %c5 = arith.constant 5 : index
    %c0_44 = arith.constant 0 : index
    %c0_45 = arith.constant 0 : index
    %49 = vector.load %arg6[%c5, %c0_44, %c0_45] : memref<8x1x128xf32, #tpu.memory_space<vmem>>, vector<1x1x128xf32>
    %50 = vector.shape_cast %49 : vector<1x1x128xf32> to vector<1x128xf32>
    %51 = arith.mulf %6, %6 : vector<1x8x128xf32>
    %cst_46 = arith.constant dense<0.000000e+00> : vector<1x128xf32>
    %52 = vector.multi_reduction <add>, %51, %cst_46 [1] : vector<1x8x128xf32> to vector<1x128xf32>
    %53 = arith.addf %50, %52 : vector<1x128xf32>
    %c5_47 = arith.constant 5 : index
    %c0_48 = arith.constant 0 : index
    %c0_49 = arith.constant 0 : index
    %54 = vector.load %arg6[%c5_47, %c0_48, %c0_49] : memref<8x1x128xf32, #tpu.memory_space<vmem>>, vector<1x1x128xf32>
    %55 = vector.shape_cast %54 : vector<1x1x128xf32> to vector<1x128xf32>
    %56 = vector.shape_cast %53 : vector<1x128xf32> to vector<1x1x128xf32>
    tpu.vector_store %arg6[%c5_47, %c0_48, %c0_49], %56 {strides = array<i32>} : memref<8x1x128xf32, #tpu.memory_space<vmem>>, vector<1x1x128xf32>,
    %c6 = arith.constant 6 : index
    %c0_50 = arith.constant 0 : index
    %c0_51 = arith.constant 0 : index
    %57 = vector.load %arg6[%c6, %c0_50, %c0_51] : memref<8x1x128xf32, #tpu.memory_space<vmem>>, vector<1x1x128xf32>
    %58 = vector.shape_cast %57 : vector<1x1x128xf32> to vector<1x128xf32>
    %59 = arith.mulf %7, %7 : vector<1x8x128xf32>
    %cst_52 = arith.constant dense<0.000000e+00> : vector<1x128xf32>
    %60 = vector.multi_reduction <add>, %59, %cst_52 [1] : vector<1x8x128xf32> to vector<1x128xf32>
    %61 = arith.addf %58, %60 : vector<1x128xf32>
    %c6_53 = arith.constant 6 : index
    %c0_54 = arith.constant 0 : index
    %c0_55 = arith.constant 0 : index
    %62 = vector.load %arg6[%c6_53, %c0_54, %c0_55] : memref<8x1x128xf32, #tpu.memory_space<vmem>>, vector<1x1x128xf32>
    %63 = vector.shape_cast %62 : vector<1x1x128xf32> to vector<1x128xf32>
    %64 = vector.shape_cast %61 : vector<1x128xf32> to vector<1x1x128xf32>
    tpu.vector_store %arg6[%c6_53, %c0_54, %c0_55], %64 {strides = array<i32>} : memref<8x1x128xf32, #tpu.memory_space<vmem>>, vector<1x1x128xf32>,
    %c7 = arith.constant 7 : index
    %c0_56 = arith.constant 0 : index
    %c0_57 = arith.constant 0 : index
    %65 = vector.load %arg6[%c7, %c0_56, %c0_57] : memref<8x1x128xf32, #tpu.memory_space<vmem>>, vector<1x1x128xf32>
    %66 = vector.shape_cast %65 : vector<1x1x128xf32> to vector<1x128xf32>
    %67 = arith.mulf %8, %8 : vector<1x8x128xf32>
    %cst_58 = arith.constant dense<0.000000e+00> : vector<1x128xf32>
    %68 = vector.multi_reduction <add>, %67, %cst_58 [1] : vector<1x8x128xf32> to vector<1x128xf32>
    %69 = arith.addf %66, %68 : vector<1x128xf32>
    %c7_59 = arith.constant 7 : index
    %c0_60 = arith.constant 0 : index
    %c0_61 = arith.constant 0 : index
    %70 = vector.load %arg6[%c7_59, %c0_60, %c0_61] : memref<8x1x128xf32, #tpu.memory_space<vmem>>, vector<1x1x128xf32>
    %71 = vector.shape_cast %70 : vector<1x1x128xf32> to vector<1x128xf32>
    %72 = vector.shape_cast %69 : vector<1x128xf32> to vector<1x1x128xf32>
    tpu.vector_store %arg6[%c7_59, %c0_60, %c0_61], %72 {strides = array<i32>} : memref<8x1x128xf32, #tpu.memory_space<vmem>>, vector<1x1x128xf32>,
    %c0_i32_62 = arith.constant 0 : i32
    %73 = arith.cmpi eq, %arg1, %c0_i32_62 : i32
    %74 = arith.extui %73 : i1 to i32
    %c0_i32_63 = arith.constant 0 : i32
    %75 = arith.cmpi ne, %74, %c0_i32_63 : i32
    scf.if %75 {
      %c0_64 = arith.constant 0 : index
      %c0_65 = arith.constant 0 : index
      %c0_66 = arith.constant 0 : index
      %76 = vector.load %arg6[%c0_64, %c0_65, %c0_66] : memref<8x1x128xf32, #tpu.memory_space<vmem>>, vector<8x1x128xf32>
      %cst_67 = arith.constant dense<0.000000e+00> : vector<8x1xf32>
      %77 = vector.multi_reduction <add>, %76, %cst_67 [2] : vector<8x1x128xf32> to vector<8x1xf32>
      %78 = vector.shape_cast %77 : vector<8x1xf32> to vector<8x1x1xf32>
      %79 = vector.extract_strided_slice %78 {offsets = [0, 0, 0], sizes = [1, 1, 1], strides = [1, 1, 1]} : vector<8x1x1xf32> to vector<1x1x1xf32>
      %80 = vector.shape_cast %79 : vector<1x1x1xf32> to vector<1x1xf32>
      %81 = vector.extract_strided_slice %78 {offsets = [1, 0, 0], sizes = [1, 1, 1], strides = [1, 1, 1]} : vector<8x1x1xf32> to vector<1x1x1xf32>
      %82 = vector.shape_cast %81 : vector<1x1x1xf32> to vector<1x1xf32>
      %83 = vector.extract_strided_slice %78 {offsets = [2, 0, 0], sizes = [1, 1, 1], strides = [1, 1, 1]} : vector<8x1x1xf32> to vector<1x1x1xf32>
      %84 = vector.shape_cast %83 : vector<1x1x1xf32> to vector<1x1xf32>
      %85 = vector.extract_strided_slice %78 {offsets = [3, 0, 0], sizes = [1, 1, 1], strides = [1, 1, 1]} : vector<8x1x1xf32> to vector<1x1x1xf32>
      %86 = vector.shape_cast %85 : vector<1x1x1xf32> to vector<1x1xf32>
      %87 = vector.extract_strided_slice %78 {offsets = [4, 0, 0], sizes = [1, 1, 1], strides = [1, 1, 1]} : vector<8x1x1xf32> to vector<1x1x1xf32>
      %88 = vector.shape_cast %87 : vector<1x1x1xf32> to vector<1x1xf32>
      %89 = vector.extract_strided_slice %78 {offsets = [5, 0, 0], sizes = [1, 1, 1], strides = [1, 1, 1]} : vector<8x1x1xf32> to vector<1x1x1xf32>
      %90 = vector.shape_cast %89 : vector<1x1x1xf32> to vector<1x1xf32>
      %91 = vector.extract_strided_slice %78 {offsets = [6, 0, 0], sizes = [1, 1, 1], strides = [1, 1, 1]} : vector<8x1x1xf32> to vector<1x1x1xf32>
      %92 = vector.shape_cast %91 : vector<1x1x1xf32> to vector<1x1xf32>
      %93 = vector.extract_strided_slice %78 {offsets = [7, 0, 0], sizes = [1, 1, 1], strides = [1, 1, 1]} : vector<8x1x1xf32> to vector<1x1x1xf32>
      %94 = vector.shape_cast %93 : vector<1x1x1xf32> to vector<1x1xf32>
      %95 = arith.mulf %80, %80 : vector<1x1xf32>
      %cst_68 = arith.constant 9.99999996E-13 : f32
      %96 = vector.broadcast %cst_68 : f32 to vector<1x1xf32>
      %97 = arith.maximumf %92, %96 : vector<1x1xf32>
      %98 = arith.divf %95, %97 : vector<1x1xf32>
      %99 = arith.subf %88, %98 : vector<1x1xf32>
      %cst_69 = arith.constant 9.99999996E-13 : f32
      %100 = vector.broadcast %cst_69 : f32 to vector<1x1xf32>
      %101 = arith.maximumf %88, %100 : vector<1x1xf32>
      %cst_70 = arith.constant 9.99999996E-13 : f32
      %102 = vector.broadcast %cst_70 : f32 to vector<1x1xf32>
      %103 = arith.mulf %102, %101 : vector<1x1xf32>
      %104 = arith.maximumf %99, %103 : vector<1x1xf32>
      %cst_71 = arith.constant 9.99999996E-13 : f32
      %105 = vector.broadcast %cst_71 : f32 to vector<1x1xf32>
      %106 = arith.maximumf %98, %105 : vector<1x1xf32>
      %107 = math.log %106 : vector<1x1xf32>
      %cst_72 = arith.constant 0.434294492 : f32
      %108 = vector.broadcast %cst_72 : f32 to vector<1x1xf32>
      %109 = arith.mulf %107, %108 : vector<1x1xf32>
      %110 = math.log %104 : vector<1x1xf32>
      %cst_73 = arith.constant 0.434294492 : f32
      %111 = vector.broadcast %cst_73 : f32 to vector<1x1xf32>
      %112 = arith.mulf %110, %111 : vector<1x1xf32>
      %113 = arith.subf %109, %112 : vector<1x1xf32>
      %cst_74 = arith.constant -1.000000e+01 : f32
      %114 = vector.broadcast %cst_74 : f32 to vector<1x1xf32>
      %115 = arith.mulf %114, %113 : vector<1x1xf32>
      %116 = arith.mulf %86, %86 : vector<1x1xf32>
      %cst_75 = arith.constant 9.99999996E-13 : f32
      %117 = vector.broadcast %cst_75 : f32 to vector<1x1xf32>
      %118 = arith.maximumf %94, %117 : vector<1x1xf32>
      %119 = arith.divf %116, %118 : vector<1x1xf32>
      %120 = arith.subf %90, %119 : vector<1x1xf32>
      %cst_76 = arith.constant 9.99999996E-13 : f32
      %121 = vector.broadcast %cst_76 : f32 to vector<1x1xf32>
      %122 = arith.maximumf %90, %121 : vector<1x1xf32>
      %cst_77 = arith.constant 9.99999996E-13 : f32
      %123 = vector.broadcast %cst_77 : f32 to vector<1x1xf32>
      %124 = arith.mulf %123, %122 : vector<1x1xf32>
      %125 = arith.maximumf %120, %124 : vector<1x1xf32>
      %cst_78 = arith.constant 9.99999996E-13 : f32
      %126 = vector.broadcast %cst_78 : f32 to vector<1x1xf32>
      %127 = arith.maximumf %119, %126 : vector<1x1xf32>
      %128 = math.log %127 : vector<1x1xf32>
      %cst_79 = arith.constant 0.434294492 : f32
      %129 = vector.broadcast %cst_79 : f32 to vector<1x1xf32>
      %130 = arith.mulf %128, %129 : vector<1x1xf32>
      %131 = math.log %125 : vector<1x1xf32>
      %cst_80 = arith.constant 0.434294492 : f32
      %132 = vector.broadcast %cst_80 : f32 to vector<1x1xf32>
      %133 = arith.mulf %131, %132 : vector<1x1xf32>
      %134 = arith.subf %130, %133 : vector<1x1xf32>
      %cst_81 = arith.constant -1.000000e+01 : f32
      %135 = vector.broadcast %cst_81 : f32 to vector<1x1xf32>
      %136 = arith.mulf %135, %134 : vector<1x1xf32>
      %137 = arith.addf %115, %136 : vector<1x1xf32>
      %138 = arith.mulf %82, %82 : vector<1x1xf32>
      %cst_82 = arith.constant 9.99999996E-13 : f32
      %139 = vector.broadcast %cst_82 : f32 to vector<1x1xf32>
      %140 = arith.maximumf %94, %139 : vector<1x1xf32>
      %141 = arith.divf %138, %140 : vector<1x1xf32>
      %142 = arith.subf %88, %141 : vector<1x1xf32>
      %cst_83 = arith.constant 9.99999996E-13 : f32
      %143 = vector.broadcast %cst_83 : f32 to vector<1x1xf32>
      %144 = arith.maximumf %88, %143 : vector<1x1xf32>
      %cst_84 = arith.constant 9.99999996E-13 : f32
      %145 = vector.broadcast %cst_84 : f32 to vector<1x1xf32>
      %146 = arith.mulf %145, %144 : vector<1x1xf32>
      %147 = arith.maximumf %142, %146 : vector<1x1xf32>
      %cst_85 = arith.constant 9.99999996E-13 : f32
      %148 = vector.broadcast %cst_85 : f32 to vector<1x1xf32>
      %149 = arith.maximumf %141, %148 : vector<1x1xf32>
      %150 = math.log %149 : vector<1x1xf32>
      %cst_86 = arith.constant 0.434294492 : f32
      %151 = vector.broadcast %cst_86 : f32 to vector<1x1xf32>
      %152 = arith.mulf %150, %151 : vector<1x1xf32>
      %153 = math.log %147 : vector<1x1xf32>
      %cst_87 = arith.constant 0.434294492 : f32
      %154 = vector.broadcast %cst_87 : f32 to vector<1x1xf32>
      %155 = arith.mulf %153, %154 : vector<1x1xf32>
      %156 = arith.subf %152, %155 : vector<1x1xf32>
      %cst_88 = arith.constant -1.000000e+01 : f32
      %157 = vector.broadcast %cst_88 : f32 to vector<1x1xf32>
      %158 = arith.mulf %157, %156 : vector<1x1xf32>
      %159 = arith.mulf %84, %84 : vector<1x1xf32>
      %cst_89 = arith.constant 9.99999996E-13 : f32
      %160 = vector.broadcast %cst_89 : f32 to vector<1x1xf32>
      %161 = arith.maximumf %92, %160 : vector<1x1xf32>
      %162 = arith.divf %159, %161 : vector<1x1xf32>
      %163 = arith.subf %90, %162 : vector<1x1xf32>
      %cst_90 = arith.constant 9.99999996E-13 : f32
      %164 = vector.broadcast %cst_90 : f32 to vector<1x1xf32>
      %165 = arith.maximumf %90, %164 : vector<1x1xf32>
      %cst_91 = arith.constant 9.99999996E-13 : f32
      %166 = vector.broadcast %cst_91 : f32 to vector<1x1xf32>
      %167 = arith.mulf %166, %165 : vector<1x1xf32>
      %168 = arith.maximumf %163, %167 : vector<1x1xf32>
      %cst_92 = arith.constant 9.99999996E-13 : f32
      %169 = vector.broadcast %cst_92 : f32 to vector<1x1xf32>
      %170 = arith.maximumf %162, %169 : vector<1x1xf32>
      %171 = math.log %170 : vector<1x1xf32>
      %cst_93 = arith.constant 0.434294492 : f32
      %172 = vector.broadcast %cst_93 : f32 to vector<1x1xf32>
      %173 = arith.mulf %171, %172 : vector<1x1xf32>
      %174 = math.log %168 : vector<1x1xf32>
      %cst_94 = arith.constant 0.434294492 : f32
      %175 = vector.broadcast %cst_94 : f32 to vector<1x1xf32>
      %176 = arith.mulf %174, %175 : vector<1x1xf32>
      %177 = arith.subf %173, %176 : vector<1x1xf32>
      %cst_95 = arith.constant -1.000000e+01 : f32
      %178 = vector.broadcast %cst_95 : f32 to vector<1x1xf32>
      %179 = arith.mulf %178, %177 : vector<1x1xf32>
      %180 = arith.addf %158, %179 : vector<1x1xf32>
      %181 = arith.minimumf %137, %180 : vector<1x1xf32>
      %182 = vector.shape_cast %181 : vector<1x1xf32> to vector<1x1x1xf32>
      %183 = vector.shape_cast %182 : vector<1x1x1xf32> to vector<1x1x1xf32>
      %184 = vector.broadcast %183 : vector<1x1x1xf32> to vector<1x1x128xf32>
      %c0_96 = arith.constant 0 : index
      %c0_97 = arith.constant 0 : index
      %c0_98 = arith.constant 0 : index
      %185 = vector.load %arg5[%c0_96, %c0_97, %c0_98] : memref<1x1x128xf32, #tpu.memory_space<vmem>>, vector<1x1x128xf32>
      tpu.vector_store %arg5[%c0_96, %c0_97, %c0_98], %184 {strides = array<i32>} : memref<1x1x128xf32, #tpu.memory_space<vmem>>, vector<1x1x128xf32>,
    } else {
    }
    return
  }
  func.func @transform_0(%arg0: i32, %arg1: i32) -> (i32, i32, i32, i32) {
    %c0_i32 = arith.constant 0 : i32
    %c0_i32_0 = arith.constant 0 : i32
    %c0_i32_1 = arith.constant 0 : i32
    return %arg0, %c0_i32, %arg1, %c0_i32_0 : i32, i32, i32, i32
  }
  func.func @transform_1(%arg0: i32, %arg1: i32) -> (i32, i32, i32) {
    %c0_i32 = arith.constant 0 : i32
    %c0_i32_0 = arith.constant 0 : i32
    return %arg0, %arg1, %c0_i32 : i32, i32, i32
  }
  func.func @transform_2(%arg0: i32, %arg1: i32) -> (i32, i32, i32) {
    %c0_i32 = arith.constant 0 : i32
    %c0_i32_0 = arith.constant 0 : i32
    return %arg0, %arg1, %c0_i32 : i32, i32, i32
  }
  func.func @transform_3(%arg0: i32, %arg1: i32) -> (i32, i32, i32) {
    %c0_i32 = arith.constant 0 : i32
    %c0_i32_0 = arith.constant 0 : i32
    %c0_i32_1 = arith.constant 0 : i32
    return %arg0, %c0_i32, %c0_i32_0 : i32, i32, i32
  }
}

</mosaic_0001>

<llo_original>
// kernel: tpu_custom_call.1
$region0: #{tpu_custom_call.1}
  #allocation0 [shape = 'u32[]', space=smem, size = 0x4, offset = 0x4, fixed_abs, tag = 'smem constant byte address 0x4 - core index']
  #allocation1 [shape = 'u32[144,128]{1,0:T(1,128)}', space=vmem, size = 0x12000, scoped, tag = 'internal scratch']
  #allocation2 [shape = 'f32[8,1,128]{2,1,0:T(1,128)}', space=vmem, size = 0x1000, scoped, tag = 'scratch operand']
  %s0 = inlined_call_operand.hbm [shape: f32[2,2,8,128], index: 0, kind: input, shape index: {}]
  %s1 = inlined_call_operand.hbm [shape: f32[2,8,128], index: 1, kind: input, shape index: {}]
  %s2 = inlined_call_operand.hbm [shape: f32[2,8,128], index: 2, kind: input, shape index: {}]
  %s3 = inlined_call_operand.hbm [shape: f32[2,1,128], index: 3, kind: output, shape index: {}]
  %s4 = sld [smem:[#allocation0]]
  $region65: #{tpu_custom_call.1} parent=0
    _
  %s6 = ssub.s32 1, %s4
  %s7 = scalar_select 0, %s6, %s4
  $region1: #{tpu_custom_call.1} parent=0
    #allocation3 [shape = 'u8[16384]{0}', space=vmem, size = 0x4000, scoped, tag = 'input window, operand 0']
    #allocation4 [shape = 's32[2]{0}', space=sflag, size = 0x8, scoped, tag = 'scoped memory for tpu_custom_call.1']
    #allocation5 [shape = 's32[2]{0}', space=sflag, size = 0x8, scoped, tag = 'scoped memory for tpu_custom_call.1']
    #allocation6 [shape = 'u8[8192]{0}', space=vmem, size = 0x2000, scoped, tag = 'input window, operand 1']
    #allocation7 [shape = 's32[2]{0}', space=sflag, size = 0x8, scoped, tag = 'scoped memory for tpu_custom_call.1']
    #allocation8 [shape = 'u8[8192]{0}', space=vmem, size = 0x2000, scoped, tag = 'input window, operand 2']
    #allocation9 [shape = 'u8[1024]{0}', space=vmem, size = 0x400, scoped, tag = 'output window, operand 0']
    %8 = vsyncpa [#allocation4], 0
    %s9 = scalar_lea.sflag [#allocation4], 1
    %10 = vsyncpa %s9, 0
    %11 = vsyncpa [#allocation7], 0
    %s12 = scalar_lea.sflag [#allocation7], 1
    %13 = vsyncpa %s12, 0
    %14 = vsyncpa [#allocation5], 0
    %s15 = scalar_lea.sflag [#allocation5], 1
    %16 = vsyncpa %s15, 0
    loop: start=0, step=1, limit=4
    $region2: #{tpu_custom_call.1} parent=1 // loop_pre_header
      _
    $region3: #{tpu_custom_call.1} parent=1 // loop_header
      %s18 = sphi 0, %s22
      %p19 = scmp.ge.s32.totalorder %s18, 4
      %s25 = sphi 0, %s37
      %s26 = sphi 0, %s33
      %s27 = sphi 0, %s25
      %s28 = sphi 0, %s26
      %s29 = sphi 0, %s27
      %s30 = sphi 0, %s28
      %s42 = sphi 0, %s44
      %s45 = sphi 0, %s42
      %s46 = sphi 0, %s45
      %s62 = sphi 0, %s46
      %s70 = sphi 0, %s72
      %s73 = sphi 0, %s70
      %s74 = sphi 0, %s73
      %s90 = sphi 0, %s74
      %s98 = sphi 0, %s100
      %s101 = sphi 0, %s98
      %s102 = sphi 0, %s101
      %s118 = sphi 0, %s102
      %s124 = sphi 0, %s126
      %s127 = sphi 0, %s124
      %s128 = sphi 0, %s127
      %s144 = sphi 0, %s128
    $region4: #{tpu_custom_call.1} parent=1 // loop_header_branch
      %21 = sbr.rel (%p19) target = $region8
    $region5: #{tpu_custom_call.1} parent=1 // loop_body
      %s23 = ssub.s32 %s18, 1
      %s24 = ssub.s32 %s18, 2
      %s31 = sadd.s32 1, %s26
      %p32 = scmp.ge.s32.totalorder %s31, 1
      %s33 = scalar_select %p32, 0, %s31
      %s34 = sadd.s32 1, %s25
      %s35 = scalar_select %p32, %s34, %s25
      %p36 = scmp.ge.s32.totalorder %s35, 2
      %s37 = scalar_select %p36, 0, %s35
      %s38 = ssub.s32 %s25, %s37
      %s39 = ssub.s32 %s26, %s33
      %s40 = sor.u32 %s38, %s39
      %p41 = scmp.eq.s32.totalorder %s40, 0
      %s43 = sadd.s32 %s42, 1
      %s44 = scalar_select %p41, %s42, %s43
      %p47 = pneg %p41
      %p48 = scmp.eq.s32.totalorder %s18, 1
      %p49 = por %p47, %p48
      %p50 = scmp.ne.s32.totalorder %s42, %s45
      %p51 = scmp.eq.s32.totalorder %s18, 0
      %p52 = por %p50, %p51
      %p53 = scmp.ne.s32.totalorder %s42, %s45
      %p54 = scmp.eq.s32.totalorder %s23, 1
      %p55 = por %p53, %p54
      %p56 = scmp.ne.s32.totalorder %s45, %s46
      %p57 = scmp.eq.s32.totalorder %s23, 0
      %p58 = por %p56, %p57
      %p59 = scmp.ne.s32.totalorder %s45, %s46
      %p60 = scmp.eq.s32.totalorder %s24, 1
      %p61 = por %p59, %p60
      %p63 = scmp.ne.s32.totalorder %s46, %s62
      %p64 = scmp.eq.s32.totalorder %s24, 0
      %p65 = por %p63, %p64
      %s66 = ssub.s32 %s25, %s37
      %s67 = ssub.s32 %s26, %s33
      %s68 = sor.u32 %s66, %s67
      %p69 = scmp.eq.s32.totalorder %s68, 0
      %s71 = sadd.s32 %s70, 1
      %s72 = scalar_select %p69, %s70, %s71
      %p75 = pneg %p69
      %p76 = scmp.eq.s32.totalorder %s18, 1
      %p77 = por %p75, %p76
      %p78 = scmp.ne.s32.totalorder %s70, %s73
      %p79 = scmp.eq.s32.totalorder %s18, 0
      %p80 = por %p78, %p79
      %p81 = scmp.ne.s32.totalorder %s70, %s73
      %p82 = scmp.eq.s32.totalorder %s23, 1
      %p83 = por %p81, %p82
      %p84 = scmp.ne.s32.totalorder %s73, %s74
      %p85 = scmp.eq.s32.totalorder %s23, 0
      %p86 = por %p84, %p85
      %p87 = scmp.ne.s32.totalorder %s73, %s74
      %p88 = scmp.eq.s32.totalorder %s24, 1
      %p89 = por %p87, %p88
      %p91 = scmp.ne.s32.totalorder %s74, %s90
      %p92 = scmp.eq.s32.totalorder %s24, 0
      %p93 = por %p91, %p92
      %s94 = ssub.s32 %s25, %s37
      %s95 = ssub.s32 %s26, %s33
      %s96 = sor.u32 %s94, %s95
      %p97 = scmp.eq.s32.totalorder %s96, 0
      %s99 = sadd.s32 %s98, 1
      %s100 = scalar_select %p97, %s98, %s99
      %p103 = pneg %p97
      %p104 = scmp.eq.s32.totalorder %s18, 1
      %p105 = por %p103, %p104
      %p106 = scmp.ne.s32.totalorder %s98, %s101
      %p107 = scmp.eq.s32.totalorder %s18, 0
      %p108 = por %p106, %p107
      %p109 = scmp.ne.s32.totalorder %s98, %s101
      %p110 = scmp.eq.s32.totalorder %s23, 1
      %p111 = por %p109, %p110
      %p112 = scmp.ne.s32.totalorder %s101, %s102
      %p113 = scmp.eq.s32.totalorder %s23, 0
      %p114 = por %p112, %p113
      %p115 = scmp.ne.s32.totalorder %s101, %s102
      %p116 = scmp.eq.s32.totalorder %s24, 1
      %p117 = por %p115, %p116
      %p119 = scmp.ne.s32.totalorder %s102, %s118
      %p120 = scmp.eq.s32.totalorder %s24, 0
      %p121 = por %p119, %p120
      %s122 = ssub.s32 %s25, %s37
      %p123 = scmp.eq.s32.totalorder %s122, 0
      %s125 = sadd.s32 %s124, 1
      %s126 = scalar_select %p123, %s124, %s125
      %p129 = pneg %p123
      %p130 = scmp.eq.s32.totalorder %s18, 1
      %p131 = por %p129, %p130
      %p132 = scmp.ne.s32.totalorder %s124, %s127
      %p133 = scmp.eq.s32.totalorder %s18, 0
      %p134 = por %p132, %p133
      %p135 = scmp.ne.s32.totalorder %s124, %s127
      %p136 = scmp.eq.s32.totalorder %s23, 1
      %p137 = por %p135, %p136
      %p138 = scmp.ne.s32.totalorder %s127, %s128
      %p139 = scmp.eq.s32.totalorder %s23, 0
      %p140 = por %p138, %p139
      %p141 = scmp.ne.s32.totalorder %s127, %s128
      %p142 = scmp.eq.s32.totalorder %s24, 1
      %p143 = por %p141, %p142
      %p145 = scmp.ne.s32.totalorder %s128, %s144
      %p146 = scmp.eq.s32.totalorder %s24, 0
      %p147 = por %p145, %p146
      %p148 = scmp.le.s32.totalorder 1, %s18
      %p149 = scmp.lt.s32.totalorder %s18, 3
      %p150 = pnand %p148, %p149
      %p151 = pneg %p150
      // Predicated region
      $region9: #{tpu_custom_call.1} parent=5 // pred_check
        _
      $region10: #{tpu_custom_call.1} parent=5 // pred_check_branch
        %153 = sbr.rel (%p150) target = $region12
      $region11: #{tpu_custom_call.1} parent=5 // pred_region
        %s154 = ssub.s32 %s18, 1
      $region12: #{tpu_custom_call.1} parent=5 // pred_fallthru
        _
      %p155 = scmp.lt.s32.totalorder %s18, 2
      // Predicated region
      $region13: #{tpu_custom_call.1} parent=5 // pred_check
        %p156 = pneg %p155
      $region14: #{tpu_custom_call.1} parent=5 // pred_check_branch
        %158 = sbr.rel (%p156) target = $region16
      $region15: #{tpu_custom_call.1} parent=5 // pred_region
        // Predicated region
        $region17: #{tpu_custom_call.1} parent=15 // pred_check
          %p159 = pneg %p52
        $region18: #{tpu_custom_call.1} parent=15 // pred_check_branch
          %161 = sbr.rel (%p159) target = $region20
        $region19: #{tpu_custom_call.1} parent=15 // pred_region
          %s162 = sand.u32 %s42, 1
          %s163 = scalar_lea.sflag [#allocation4], %s162
          %s164 = sand.u32 %s42, 1
          %s165 = smul.addr %s164, 16
          %s166 = scalar_lea.vmem [#allocation3], %s165
          %s168 = ssub.s32 256, 256
          %169 = vsyncadd %s163, %s168
          %s170 = smul.addr %s25, 2
          %s171 = sadd.s32 %s26, %s170
          %s172 = smul.addr %s171, 128
          %s173 = scalar_lea.hbm %s0, %s172
          %s174 = sshll.u32 %s166, 4
          %s175 = int_to_ptr.vmem [resolvable:$true] %s174
          %180 = dma.hbm_to_vmem [thread:$0]  %s173, 256, %s175, %s163, 128, 128, 8
        $region20: #{tpu_custom_call.1} parent=15 // pred_fallthru
          _
        // Predicated region
        $region21: #{tpu_custom_call.1} parent=15 // pred_check
          %p181 = pneg %p80
        $region22: #{tpu_custom_call.1} parent=15 // pred_check_branch
          %183 = sbr.rel (%p181) target = $region24
        $region23: #{tpu_custom_call.1} parent=15 // pred_region
          %s184 = sand.u32 %s18, 1
          %s185 = scalar_lea.sflag [#allocation7], %s184
          %s186 = sand.u32 %s70, 1
          %s187 = smul.addr %s186, 8
          %s188 = scalar_lea.vmem [#allocation6], %s187
          %s190 = ssub.s32 128, 128
          %191 = vsyncadd %s185, %s190
          %s192 = sadd.s32 %s26, %s25
          %s193 = smul.addr %s192, 128
          %s194 = scalar_lea.hbm %s1, %s193
          %s196 = sshll.u32 %s188, 4
          %s197 = int_to_ptr.vmem [resolvable:$true] %s196
          %199 = dma.hbm_to_vmem [thread:$0]  %s194, 128, %s197, %s185
        $region24: #{tpu_custom_call.1} parent=15 // pred_fallthru
          _
        // Predicated region
        $region25: #{tpu_custom_call.1} parent=15 // pred_check
          %p200 = pneg %p108
        $region26: #{tpu_custom_call.1} parent=15 // pred_check_branch
          %202 = sbr.rel (%p200) target = $region28
        $region27: #{tpu_custom_call.1} parent=15 // pred_region
          %s203 = sand.u32 %s18, 1
          %s204 = scalar_lea.sflag [#allocation7], %s203
          %s205 = sand.u32 %s98, 1
          %s206 = smul.addr %s205, 8
          %s207 = scalar_lea.vmem [#allocation8], %s206
          %s209 = ssub.s32 128, 128
          %210 = vsyncadd %s204, %s209
          %s211 = sadd.s32 %s26, %s25
          %s212 = smul.addr %s211, 128
          %s213 = scalar_lea.hbm %s2, %s212
          %s215 = sshll.u32 %s207, 4
          %s216 = int_to_ptr.vmem [resolvable:$true] %s215
          %218 = dma.hbm_to_vmem [thread:$0]  %s213, 128, %s216, %s204
        $region28: #{tpu_custom_call.1} parent=15 // pred_fallthru
          _
      $region16: #{tpu_custom_call.1} parent=5 // pred_fallthru
        _
      %p219 = scmp.le.s32.totalorder 1, %s18
      %p220 = scmp.lt.s32.totalorder %s18, 3
      %p221 = pnand %p219, %p220
      %p222 = pneg %p221
      // Predicated region
      $region29: #{tpu_custom_call.1} parent=5 // pred_check
        _
      $region30: #{tpu_custom_call.1} parent=5 // pred_check_branch
        %224 = sbr.rel (%p221) target = $region32
      $region31: #{tpu_custom_call.1} parent=5 // pred_region
        %s225 = ssub.s32 %s18, 1
        %s226 = sand.u32 %s45, 1
        %s227 = scalar_lea.sflag [#allocation4], %s226
        %s228 = sand.u32 %s45, 1
        %s229 = smul.addr %s228, 16
        %s230 = scalar_lea.vmem [#allocation3], %s229
        // Predicated region
        $region33: #{tpu_custom_call.1} parent=31 // pred_check
          %p231 = pneg %p58
        $region34: #{tpu_custom_call.1} parent=31 // pred_check_branch
          %233 = sbr.rel (%p231) target = $region36
        $region35: #{tpu_custom_call.1} parent=31 // pred_region
          %234 = dma.done %s227, 256
        $region36: #{tpu_custom_call.1} parent=31 // pred_fallthru
          _
        %s235 = sand.u32 %s23, 1
        %s236 = scalar_lea.sflag [#allocation7], %s235
        %s237 = sand.u32 %s73, 1
        %s238 = smul.addr %s237, 8
        %s239 = scalar_lea.vmem [#allocation6], %s238
        // Predicated region
        $region37: #{tpu_custom_call.1} parent=31 // pred_check
          %p240 = pneg %p86
        $region38: #{tpu_custom_call.1} parent=31 // pred_check_branch
          %242 = sbr.rel (%p240) target = $region40
        $region39: #{tpu_custom_call.1} parent=31 // pred_region
          %243 = dma.done %s236, 128
        $region40: #{tpu_custom_call.1} parent=31 // pred_fallthru
          _
        %s244 = sand.u32 %s23, 1
        %s245 = scalar_lea.sflag [#allocation7], %s244
        %s246 = sand.u32 %s101, 1
        %s247 = smul.addr %s246, 8
        %s248 = scalar_lea.vmem [#allocation8], %s247
        // Predicated region
        $region41: #{tpu_custom_call.1} parent=31 // pred_check
          %p249 = pneg %p114
        $region42: #{tpu_custom_call.1} parent=31 // pred_check_branch
          %251 = sbr.rel (%p249) target = $region44
        $region43: #{tpu_custom_call.1} parent=31 // pred_region
          %252 = dma.done %s245, 128
        $region44: #{tpu_custom_call.1} parent=31 // pred_fallthru
          _
        %s253 = sand.u32 %s45, 1
        %s254 = scalar_lea.sflag [#allocation4], %s253
        %s255 = sand.u32 %s45, 1
        %s256 = smul.addr %s255, 16
        %s257 = scalar_lea.vmem [#allocation3], %s256
        %p258 = pneg %p58
        %p259 = pneg %p55
        %s260 = sand.u32 %s23, 1
        %s261 = scalar_lea.sflag [#allocation7], %s260
        %s262 = sand.u32 %s73, 1
        %s263 = smul.addr %s262, 8
        %s264 = scalar_lea.vmem [#allocation6], %s263
        %p265 = pneg %p86
        %p266 = pneg %p83
        %s267 = sand.u32 %s23, 1
        %s268 = scalar_lea.sflag [#allocation7], %s267
        %s269 = sand.u32 %s101, 1
        %s270 = smul.addr %s269, 8
        %s271 = scalar_lea.vmem [#allocation8], %s270
        %p272 = pneg %p114
        %p273 = pneg %p111
        %p274 = pneg %p140
        %p275 = pneg %p137
        %s276 = sand.u32 %s127, 1
        %s277 = scalar_lea.sflag [#allocation5], %s276
        %s278 = sand.u32 %s127, 1
        %s279 = scalar_lea.vmem [#allocation9], %s278
        %p280 = scmp.eq.s32.totalorder %s28, 0
        // Predicated region
        $region45: #{tpu_custom_call.1} parent=31 // pred_check
          %p281 = pneg %p280
        $region46: #{tpu_custom_call.1} parent=31 // pred_check_branch
          %283 = sbr.rel (%p281) target = $region48
        $region47: #{tpu_custom_call.1} parent=31 // pred_region
          %284 = vst [vmem:[#allocation2] sm:$0x1] 0.0
          %285 = vst [vmem:[#allocation2 + $0x1] sm:$0x1] 0.0
          %286 = vst [vmem:[#allocation2 + $0x2] sm:$0x1] 0.0
          %287 = vst [vmem:[#allocation2 + $0x3] sm:$0x1] 0.0
          %288 = vst [vmem:[#allocation2 + $0x4] sm:$0x1] 0.0
          %289 = vst [vmem:[#allocation2 + $0x5] sm:$0x1] 0.0
          %290 = vst [vmem:[#allocation2 + $0x6] sm:$0x1] 0.0
          %291 = vst [vmem:[#allocation2 + $0x7] sm:$0x1] 0.0
        $region48: #{tpu_custom_call.1} parent=31 // pred_fallthru
          _
        %v292 = vld [vmem:[%s230] sm:$0xff]
        %s293 = scalar_lea.vmem %s230, 8 [#allocation3]
        %v294 = vld [vmem:[%s293] sm:$0xff]
        %v295 = vld [vmem:[%s239] sm:$0xff]
        %v296 = vld [vmem:[%s248] sm:$0xff]
        %v297 = vld [vmem:[#allocation2] sm:$0x1]
        %v298 = vmul.f32 %v292, %v295
        %v299 = vrot.slane %v298, 4
        %v300 = vadd.f32 %v298, %v299
        %v301 = vrot.slane %v300, 2
        %v302 = vadd.f32 %v300, %v301
        %v303 = vrot.slane %v302, 1
        %v304 = vadd.f32 %v302, %v303
        %v305 = vadd.f32 %v297, %v304
        %306 = vst [vmem:[#allocation2] sm:$0x1] %v305
        %s307 = scalar_lea.vmem [#allocation2], 1
        %v308 = vld [vmem:[%s307] sm:$0x1]
        %v309 = vmul.f32 %v292, %v296
        %v310 = vrot.slane %v309, 4
        %v311 = vadd.f32 %v309, %v310
        %v312 = vrot.slane %v311, 2
        %v313 = vadd.f32 %v311, %v312
        %v314 = vrot.slane %v313, 1
        %v315 = vadd.f32 %v313, %v314
        %v316 = vadd.f32 %v308, %v315
        %317 = vst [vmem:[%s307] sm:$0x1] %v316
        %s318 = scalar_lea.vmem [#allocation2], 2
        %v319 = vld [vmem:[%s318] sm:$0x1]
        %v320 = vmul.f32 %v294, %v295
        %v321 = vrot.slane %v320, 4
        %v322 = vadd.f32 %v320, %v321
        %v323 = vrot.slane %v322, 2
        %v324 = vadd.f32 %v322, %v323
        %v325 = vrot.slane %v324, 1
        %v326 = vadd.f32 %v324, %v325
        %v327 = vadd.f32 %v319, %v326
        %328 = vst [vmem:[%s318] sm:$0x1] %v327
        %s329 = scalar_lea.vmem [#allocation2], 3
        %v330 = vld [vmem:[%s329] sm:$0x1]
        %v331 = vmul.f32 %v294, %v296
        %v332 = vrot.slane %v331, 4
        %v333 = vadd.f32 %v331, %v332
        %v334 = vrot.slane %v333, 2
        %v335 = vadd.f32 %v333, %v334
        %v336 = vrot.slane %v335, 1
        %v337 = vadd.f32 %v335, %v336
        %v338 = vadd.f32 %v330, %v337
        %339 = vst [vmem:[%s329] sm:$0x1] %v338
        %s340 = scalar_lea.vmem [#allocation2], 4
        %v341 = vld [vmem:[%s340] sm:$0x1]
        %v342 = vmul.f32 %v292, %v292
        %v343 = vrot.slane %v342, 4
        %v344 = vadd.f32 %v342, %v343
        %v345 = vrot.slane %v344, 2
        %v346 = vadd.f32 %v344, %v345
        %v347 = vrot.slane %v346, 1
        %v348 = vadd.f32 %v346, %v347
        %v349 = vadd.f32 %v341, %v348
        %350 = vst [vmem:[%s340] sm:$0x1] %v349
        %s351 = scalar_lea.vmem [#allocation2], 5
        %v352 = vld [vmem:[%s351] sm:$0x1]
        %v353 = vmul.f32 %v294, %v294
        %v354 = vrot.slane %v353, 4
        %v355 = vadd.f32 %v353, %v354
        %v356 = vrot.slane %v355, 2
        %v357 = vadd.f32 %v355, %v356
        %v358 = vrot.slane %v357, 1
        %v359 = vadd.f32 %v357, %v358
        %v360 = vadd.f32 %v352, %v359
        %361 = vst [vmem:[%s351] sm:$0x1] %v360
        %s362 = scalar_lea.vmem [#allocation2], 6
        %v363 = vld [vmem:[%s362] sm:$0x1]
        %v364 = vmul.f32 %v295, %v295
        %v365 = vrot.slane %v364, 4
        %v366 = vadd.f32 %v364, %v365
        %v367 = vrot.slane %v366, 2
        %v368 = vadd.f32 %v366, %v367
        %v369 = vrot.slane %v368, 1
        %v370 = vadd.f32 %v368, %v369
        %v371 = vadd.f32 %v363, %v370
        %372 = vst [vmem:[%s362] sm:$0x1] %v371
        %s373 = scalar_lea.vmem [#allocation2], 7
        %v374 = vld [vmem:[%s373] sm:$0x1]
        %v375 = vmul.f32 %v296, %v296
        %v376 = vrot.slane %v375, 4
        %v377 = vadd.f32 %v375, %v376
        %v378 = vrot.slane %v377, 2
        %v379 = vadd.f32 %v377, %v378
        %v380 = vrot.slane %v379, 1
        %v381 = vadd.f32 %v379, %v380
        %v382 = vadd.f32 %v374, %v381
        %383 = vst [vmem:[%s373] sm:$0x1] %v382
        // Predicated region
        $region49: #{tpu_custom_call.1} parent=31 // pred_check
          %p384 = pneg %p280
        $region50: #{tpu_custom_call.1} parent=31 // pred_check_branch
          %386 = sbr.rel (%p384) target = $region52
        $region51: #{tpu_custom_call.1} parent=31 // pred_region
          %v387 = vld [vmem:[#allocation2] sm:$0x1]
          %v388 = vld [vmem:[#allocation2 + $0x1] sm:$0x1]
          %v389 = vld [vmem:[#allocation2 + $0x2] sm:$0x1]
          %v390 = vld [vmem:[#allocation2 + $0x3] sm:$0x1]
          %v391 = vld [vmem:[#allocation2 + $0x4] sm:$0x1]
          %v392 = vld [vmem:[#allocation2 + $0x5] sm:$0x1]
          %v393 = vld [vmem:[#allocation2 + $0x6] sm:$0x1]
          %v394 = vld [vmem:[#allocation2 + $0x7] sm:$0x1]
          %vm395 = vcmask 1040384
          %v396 = vsel %vm395, %v387, 0.0
          %397 = vadd.xlane.f32.xlu0 %v396
          %v398 = vpop.xlane.xlu0 %397
          %v399 = vsel %vm395, %v388, 0.0
          %400 = vadd.xlane.f32.xlu0 %v399
          %v401 = vpop.xlane.xlu0 %400
          %v402 = vsel %vm395, %v389, 0.0
          %403 = vadd.xlane.f32.xlu0 %v402
          %v404 = vpop.xlane.xlu0 %403
          %v405 = vsel %vm395, %v390, 0.0
          %406 = vadd.xlane.f32.xlu0 %v405
          %v407 = vpop.xlane.xlu0 %406
          %v408 = vsel %vm395, %v391, 0.0
          %409 = vadd.xlane.f32.xlu0 %v408
          %v410 = vpop.xlane.xlu0 %409
          %v411 = vsel %vm395, %v392, 0.0
          %412 = vadd.xlane.f32.xlu0 %v411
          %v413 = vpop.xlane.xlu0 %412
          %v414 = vsel %vm395, %v393, 0.0
          %415 = vadd.xlane.f32.xlu0 %v414
          %v416 = vpop.xlane.xlu0 %415
          %v417 = vsel %vm395, %v394, 0.0
          %418 = vadd.xlane.f32.xlu0 %v417
          %v419 = vpop.xlane.xlu0 %418
          %v420 = vmul.f32 %v398, %v398
          %v421 = vmax.f32 %v416, 1e-12
          %v422 = vrcp.pop %v421
          %v423 = vmul.f32 %v420, %v422
          %v424 = vsub.f32 %v410, %v423
          %v425 = vmax.f32 %v410, 1e-12
          %v426 = vmul.f32 %v425, 1e-12
          %v427 = vmax.f32 %v424, %v426
          %v428 = vmax.f32 %v423, 1e-12
          %v429 = vlog2.pop %v428
          %v430 = vmul.f32 %v429, 0.6931472
          %v431 = vmul.f32 %v430, 0.4342945
          %v432 = vlog2.pop %v427
          %v433 = vmul.f32 %v432, 0.6931472
          %v434 = vmul.f32 %v433, 0.4342945
          %v435 = vsub.f32 %v431, %v434
          %v436 = vmul.f32 %v435, -10.0
          %v437 = vmul.f32 %v407, %v407
          %v438 = vmax.f32 %v419, 1e-12
          %v439 = vrcp.pop %v438
          %v440 = vmul.f32 %v437, %v439
          %v441 = vsub.f32 %v413, %v440
          %v442 = vmax.f32 %v413, 1e-12
          %v443 = vmul.f32 %v442, 1e-12
          %v444 = vmax.f32 %v441, %v443
          %v445 = vmax.f32 %v440, 1e-12
          %v446 = vlog2.pop %v445
          %v447 = vmul.f32 %v446, 0.6931472
          %v448 = vmul.f32 %v447, 0.4342945
          %v449 = vlog2.pop %v444
          %v450 = vmul.f32 %v449, 0.6931472
          %v451 = vmul.f32 %v450, 0.4342945
          %v452 = vsub.f32 %v448, %v451
          %v453 = vmul.f32 %v452, -10.0
          %v454 = vadd.f32 %v436, %v453
          %v455 = vmul.f32 %v401, %v401
          %v456 = vmul.f32 %v455, %v439
          %v457 = vsub.f32 %v410, %v456
          %v458 = vmax.f32 %v457, %v426
          %v459 = vmax.f32 %v456, 1e-12
          %v460 = vlog2.pop %v459
          %v461 = vmul.f32 %v460, 0.6931472
          %v462 = vmul.f32 %v461, 0.4342945
          %v463 = vlog2.pop %v458
          %v464 = vmul.f32 %v463, 0.6931472
          %v465 = vmul.f32 %v464, 0.4342945
          %v466 = vsub.f32 %v462, %v465
          %v467 = vmul.f32 %v466, -10.0
          %v468 = vmul.f32 %v404, %v404
          %v469 = vmul.f32 %v468, %v422
          %v470 = vsub.f32 %v413, %v469
          %v471 = vmax.f32 %v470, %v443
          %v472 = vmax.f32 %v469, 1e-12
          %v473 = vlog2.pop %v472
          %v474 = vmul.f32 %v473, 0.6931472
          %v475 = vmul.f32 %v474, 0.4342945
          %v476 = vlog2.pop %v471
          %v477 = vmul.f32 %v476, 0.6931472
          %v478 = vmul.f32 %v477, 0.4342945
          %v479 = vsub.f32 %v475, %v478
          %v480 = vmul.f32 %v479, -10.0
          %v481 = vadd.f32 %v467, %v480
          %v482 = vmin.f32 %v454, %v481
          %483 = vst [vmem:[%s279] sm:$0x1] %v482
        $region52: #{tpu_custom_call.1} parent=31 // pred_fallthru
          _
        %s484 = sand.u32 %s127, 1
        %s485 = scalar_lea.sflag [#allocation5], %s484
        %s486 = sand.u32 %s127, 1
        %s487 = scalar_lea.vmem [#allocation9], %s486
        // Predicated region
        $region53: #{tpu_custom_call.1} parent=31 // pred_check
          %p488 = pneg %p137
        $region54: #{tpu_custom_call.1} parent=31 // pred_check_branch
          %490 = sbr.rel (%p488) target = $region56
        $region55: #{tpu_custom_call.1} parent=31 // pred_region
          %s492 = ssub.s32 16, 16
          %493 = vsyncadd %s485, %s492
          %s494 = smul.addr %s27, 16
          %s495 = scalar_lea.hbm %s3, %s494
          %s497 = sshll.u32 %s487, 4
          %s498 = int_to_ptr.vmem [resolvable:$true] %s497
          %500 = dma.vmem_to_hbm [thread:$0]  %s498, 16, %s495, %s485
        $region56: #{tpu_custom_call.1} parent=31 // pred_fallthru
          _
      $region32: #{tpu_custom_call.1} parent=5 // pred_fallthru
        _
      %p501 = scmp.le.s32.totalorder 2, %s18
      // Predicated region
      $region57: #{tpu_custom_call.1} parent=5 // pred_check
        %p502 = pneg %p501
      $region58: #{tpu_custom_call.1} parent=5 // pred_check_branch
        %504 = sbr.rel (%p502) target = $region60
      $region59: #{tpu_custom_call.1} parent=5 // pred_region
        %s505 = ssub.s32 %s18, 2
        // Predicated region
        $region61: #{tpu_custom_call.1} parent=59 // pred_check
          %p506 = pneg %p143
        $region62: #{tpu_custom_call.1} parent=59 // pred_check_branch
          %508 = sbr.rel (%p506) target = $region64
        $region63: #{tpu_custom_call.1} parent=59 // pred_region
          %s509 = sand.u32 %s128, 1
          %s510 = scalar_lea.sflag [#allocation5], %s509
          %s511 = sand.u32 %s128, 1
          %s512 = scalar_lea.vmem [#allocation9], %s511
          %513 = dma.done %s510, 16
        $region64: #{tpu_custom_call.1} parent=59 // pred_fallthru
          _
      $region60: #{tpu_custom_call.1} parent=5 // pred_fallthru
        _
    $region6: #{tpu_custom_call.1} parent=1 // loop_footer
      %s22 = sadd.s32 1, %s18
    $region7: #{tpu_custom_call.1} parent=1 // loop_footer_branch
      %17 = sbr.rel target = $region3
    $region8: #{tpu_custom_call.1} parent=1 // loop_exit
      _
    %514 = vsyncpa [#allocation4], 1
    %s515 = scalar_lea.sflag [#allocation4], 1
    %516 = vsyncpa %s515, 1
    %517 = vsyncpa [#allocation7], 1
    %s518 = scalar_lea.sflag [#allocation7], 1
    %519 = vsyncpa %s518, 1
    %520 = vsyncpa [#allocation5], 1
    %s521 = scalar_lea.sflag [#allocation5], 1
    %522 = vsyncpa %s521, 1

</llo_original>
